<compile_context>
chip_gen: v7x
topology: tpu7x:2x2x1
jax: 0.10.0
libtpu: 0.0.40
codegen_flags: <defaults>
</compile_context>

<pallas_src>
import functools

import jax
import jax.numpy as jnp
from jax.experimental import pallas as pl
from jax.experimental.pallas import tpu as pltpu


def _round_up(x, m):
    return (x + m - 1) // m * m


def _sigmoid_eup(x):
    # sigmoid(x) = 0.5 * tanh(x / 2) + 0.5 : tanh goes to the EUP slot, no f32
    # divide on the VALU (matters on v7x where HBM writeback is fast enough
    # that the epilogue VALU work can become the binding VLIW slot).
    return 0.5 * jnp.tanh(0.5 * x) + 0.5


def _pick_dense_tiles(N):
    """(row tile, col tile) for the (N, N) output.

    Prefer big, lane-dense output tiles (512 x 1024 f32 ~= 2 MiB, double
    buffered 4 MiB), but shrink (down to 128) while a parallel grid axis would
    otherwise have a single block, so v7x's two TensorCores both get work.
    """
    def shrink(t):
        while t > 128 and (N + t - 1) // t < 2:
            t //= 2
        return t
    return shrink(512), shrink(1024)


# ---------------------------------------------------------------------------
# Dense path: sigmoid(Z @ Z.T)
# ---------------------------------------------------------------------------
def _dense_kernel(z_row_ref, z_col_ref, o_ref):
    # z_row_ref: (tm, d), z_col_ref: (tn, d) -> o_ref: (tm, tn)
    # NT matmul: contract axis 1 of both operands directly on the MXU.
    s = jax.lax.dot_general(
        z_row_ref[...],
        z_col_ref[...],
        dimension_numbers=(((1,), (1,)), ((), ())),
        preferred_element_type=jnp.float32,
    )
    if o_ref.dtype == jnp.bfloat16:
        # bf16 epilogue: halves VPU/EUP work on v6e/v7x (legalized via upcast
        # on v5e, where HBM writeback still binds anyway).
        s = s.astype(jnp.bfloat16)
    o_ref[...] = _sigmoid_eup(s).astype(o_ref.dtype)


@functools.partial(jax.jit, static_argnames=("out_dtype",))
def inner_product_decode_dense(z, out_dtype=None):
    """sigmoid(z @ z.T), z: (N, d) -> (N, N).

    out_dtype: optional narrower output dtype (e.g. jnp.bfloat16).  The dense
    path is purely writeback-bound, so halving output bytes ~halves wall-clock.
    """
    N, d = z.shape
    out_dtype = z.dtype if out_dtype is None else out_dtype
    tm, tn = _pick_dense_tiles(N)
    grid = (pl.cdiv(N, tm), pl.cdiv(N, tn))
    return pl.pallas_call(
        _dense_kernel,
        out_shape=jax.ShapeDtypeStruct((N, N), out_dtype),
        grid_spec=pltpu.PrefetchScalarGridSpec(
            num_scalar_prefetch=0,
            grid=grid,
            in_specs=[
                pl.BlockSpec((tm, d), lambda i, j: (i, 0)),  # row tile of Z
                pl.BlockSpec((tn, d), lambda i, j: (j, 0)),  # col tile of Z
            ],
            out_specs=pl.BlockSpec((tm, tn), lambda i, j: (i, j)),
        ),
        compiler_params=pltpu.CompilerParams(
            dimension_semantics=("parallel", "parallel"),
        ),
    )(z, z)


# ---------------------------------------------------------------------------
# Edge path: sigmoid(sum(z[src] * z[dst], axis=1))
# ---------------------------------------------------------------------------
def _edge_kernel(zi_ref, zj_ref, o_ref):
    # zi_ref, zj_ref: (d, TE) -- edges along the lane axis (lane-dense).
    # Reduce over sublanes (axis 0) so the result is already lane-major,
    # then store a full lane-dense TE-wide row.
    p = zi_ref[...].astype(jnp.float32) * zj_ref[...].astype(jnp.float32)
    s = jnp.sum(p, axis=0, keepdims=True)            # (1, TE), f32
    o_ref[...] = _sigmoid_eup(s).astype(o_ref.dtype)  # (1, TE)


@jax.jit
def _edge_pallas(zi_t, zj_t, out_dtype_arr):
    d, E_pad = zi_t.shape
    TE = min(8192, E_pad)                             # big lane-dense tiles
    grid = (pl.cdiv(E_pad, TE),)
    return pl.pallas_call(
        _edge_kernel,
        out_shape=jax.ShapeDtypeStruct((1, E_pad), out_dtype_arr.dtype),
        grid_spec=pltpu.PrefetchScalarGridSpec(
            num_scalar_prefetch=0,
            grid=grid,
            in_specs=[
                pl.BlockSpec((d, TE), lambda i: (0, i)),
                pl.BlockSpec((d, TE), lambda i: (0, i)),
            ],
            out_specs=pl.BlockSpec((1, TE), lambda i: (0, i)),
        ),
        compiler_params=pltpu.CompilerParams(
            dimension_semantics=("parallel",),
        ),
    )(zi_t, zj_t)


@jax.jit
def inner_product_decode_edges(z, edge_index):
    """sigmoid((z[edge_index[0]] * z[edge_index[1]]).sum(-1)) -> (E,)."""
    E = edge_index.shape[1]
    if E == 0:                                        # empty grid guard
        return jnp.zeros((0,), z.dtype)
    E_pad = _round_up(E, 128)                         # minimal lane padding
    src = edge_index[0]
    dst = edge_index[1]
    if E_pad != E:
        pad = E_pad - E
        src = jnp.pad(src, (0, pad))                  # padded edges -> node 0,
        dst = jnp.pad(dst, (0, pad))                  # sliced off below.

    # TODO(synk): fuse the gather into the kernel (Z VMEM-resident via a
    # constant-index full-array BlockSpec + SMEM index tiles) to avoid the
    # extra HBM round-trip of zi/zj when E >> N (watch v7x's 64 MiB VMEM).
    zi_t = jnp.take(z, src, axis=0).T                 # (d, E_pad)
    zj_t = jnp.take(z, dst, axis=0).T                 # (d, E_pad)

    out = _edge_pallas(zi_t, zj_t, z)
    return out.reshape(E_pad)[:E]


# ---------------------------------------------------------------------------
# Module-style wrapper (activation fixed to 'sigmoid' as in the PyTorch default)
# ---------------------------------------------------------------------------
class InnerProductDecoder:
    def __init__(self, activation="sigmoid"):
        # TODO(synk): only the default 'sigmoid' activation is implemented.
        assert activation == "sigmoid"

    def __call__(self, z, edge_index=None, out_dtype=None):
        if edge_index is None:
            return inner_product_decode_dense(z, out_dtype=out_dtype)
        return inner_product_decode_edges(z, edge_index)


if __name__ == "__main__":
    key = jax.random.PRNGKey(0)
    k_z, k_e, k_z2 = jax.random.split(key, 3)

    N, d = 256, 32          # N nodes, latent dim d (module has no learnable params)
    E = 16                  # number of node pairs for the edge_index path

    z = jax.random.normal(k_z, (N, d), dtype=jnp.float32)
    edge_index = jax.random.randint(k_e, (2, E), 0, N, dtype=jnp.int32)

    decoder = InnerProductDecoder("sigmoid")

    # Dense path
    out_dense = jax.block_until_ready(decoder(z))
    ref_dense = jax.nn.sigmoid(z @ z.T)
    assert out_dense.shape == (N, N)
    assert jnp.allclose(out_dense, ref_dense, atol=5e-5, rtol=5e-5)

    # Dense path, N not a multiple of 128 (exercises the ragged cdiv blocks,
    # no pad/slice round-trip).
    N2 = 200
    z2 = jax.random.normal(k_z2, (N2, d), dtype=jnp.float32)
    out_dense2 = jax.block_until_ready(decoder(z2))
    ref_dense2 = jax.nn.sigmoid(z2 @ z2.T)
    assert out_dense2.shape == (N2, N2)
    assert jnp.allclose(out_dense2, ref_dense2, atol=5e-5, rtol=5e-5)

    # Edge path
    out_edges = jax.block_until_ready(decoder(z, edge_index))
    ref_edges = jax.nn.sigmoid(
        jnp.sum(z[edge_index[0]] * z[edge_index[1]], axis=1)
    )
    assert out_edges.shape == (E,)
    assert jnp.allclose(out_edges, ref_edges, atol=5e-5, rtol=5e-5)

    # Edge path, E == 0 (early-out, no empty pallas grid)
    empty_edges = jnp.zeros((2, 0), dtype=jnp.int32)
    out_empty = jax.block_until_ready(decoder(z, empty_edges))
    assert out_empty.shape == (0,)

    print("KERNEL_OK")
</pallas_src>

<mosaic_0001>
module attributes {stable_mosaic.version = 11 : i64} {
  func.func @_dense_kernel(%arg0: i32, %arg1: i32, %arg2: memref<128x32xf32, #tpu.memory_space<vmem>>, %arg3: memref<128x32xf32, #tpu.memory_space<vmem>>, %arg4: memref<128x128xf32, #tpu.memory_space<vmem>>) attributes {dimension_semantics = [#tpu.dimension_semantics<parallel>, #tpu.dimension_semantics<parallel>], iteration_bounds = array<i64: 2, 2>, scalar_prefetch = 0 : i64, scratch_operands = 0 : i64, tpu.core_type = #tpu.core_type<tc>, window_params = [{transform_indices = @transform_0, window_bounds = array<i64: 128, 32>}, {transform_indices = @transform_1, window_bounds = array<i64: 128, 32>}, {transform_indices = @transform_2, window_bounds = array<i64: 128, 128>}]} {
    %c0 = arith.constant 0 : index
    %c0_0 = arith.constant 0 : index
    %0 = vector.load %arg2[%c0, %c0_0] : memref<128x32xf32, #tpu.memory_space<vmem>>, vector<128x32xf32>
    %c0_1 = arith.constant 0 : index
    %c0_2 = arith.constant 0 : index
    %1 = vector.load %arg3[%c0_1, %c0_2] : memref<128x32xf32, #tpu.memory_space<vmem>>, vector<128x32xf32>
    %cst = arith.constant dense<0.000000e+00> : vector<128x128xf32>
    %2 = tpu.matmul %0, %1, %cst {dimension_numbers = #tpu.dot_dimension_numbers<[1], [1], [0], [0], [0, 0, 1, 0], [], []>} : vector<128x32xf32>, vector<128x32xf32>, vector<128x128xf32> -> vector<128x128xf32>
    %cst_3 = arith.constant 5.000000e-01 : f32
    %3 = vector.broadcast %cst_3 : f32 to vector<128x128xf32>
    %4 = arith.mulf %3, %2 : vector<128x128xf32>
    %5 = math.tanh %4 : vector<128x128xf32>
    %cst_4 = arith.constant 5.000000e-01 : f32
    %6 = vector.broadcast %cst_4 : f32 to vector<128x128xf32>
    %7 = arith.mulf %6, %5 : vector<128x128xf32>
    %cst_5 = arith.constant 5.000000e-01 : f32
    %8 = vector.broadcast %cst_5 : f32 to vector<128x128xf32>
    %9 = arith.addf %7, %8 : vector<128x128xf32>
    %c0_6 = arith.constant 0 : index
    %c0_7 = arith.constant 0 : index
    %10 = vector.load %arg4[%c0_6, %c0_7] : memref<128x128xf32, #tpu.memory_space<vmem>>, vector<128x128xf32>
    tpu.vector_store %arg4[%c0_6, %c0_7], %9 {strides = array<i32>} : memref<128x128xf32, #tpu.memory_space<vmem>>, vector<128x128xf32>,
    return
  }
  func.func @transform_0(%arg0: i32, %arg1: i32) -> (i32, i32) {
    %c0_i32 = arith.constant 0 : i32
    %c0_i32_0 = arith.constant 0 : i32
    return %arg0, %c0_i32 : i32, i32
  }
  func.func @transform_1(%arg0: i32, %arg1: i32) -> (i32, i32) {
    %c0_i32 = arith.constant 0 : i32
    %c0_i32_0 = arith.constant 0 : i32
    return %arg1, %c0_i32 : i32, i32
  }
  func.func @transform_2(%arg0: i32, %arg1: i32) -> (i32, i32) {
    %c0_i32 = arith.constant 0 : i32
    return %arg0, %arg1 : i32, i32
  }
}

</mosaic_0001>

<llo_original>
// kernel: inner_product_decode_dense.1
$region0: #{inner_product_decode_dense.1}
  #allocation0 [shape = 'u32[]', space=smem, size = 0x4, offset = 0x4, fixed_abs, tag = 'smem constant byte address 0x4 - core index']
  #allocation1 [shape = 'u32[144,128]{1,0:T(1,128)}', space=vmem, size = 0x12000, scoped, tag = 'internal scratch']
  %s0 = inlined_call_operand.vmem [shape: f32[256,32], index: 0, kind: input, shape index: {}, may-alias: {0,1}]
  %s1 = inlined_call_operand.vmem [shape: f32[256,32], index: 1, kind: input, shape index: {}, may-alias: {0,1}]
  %s2 = inlined_call_operand.hbm [shape: f32[256,256], index: 2, kind: output, shape index: {}]
  %s3 = sld [smem:[#allocation0]]
  $region41: #{inner_product_decode_dense.1} parent=0
    _
  %s5 = ssub.s32 1, %s3
  %s6 = scalar_select 0, %s5, %s3
  $region1: #{inner_product_decode_dense.1} parent=0
    #allocation2 [shape = 'u8[131072]{0}', space=vmem, size = 0x20000, scoped, tag = 'output window, operand 0']
    #allocation3 [shape = 's32[2]{0}', space=sflag, size = 0x8, scoped, tag = 'scoped memory for inner_product_decode_dense.1']
    %7 = vsyncpa [#allocation3], 0
    %s8 = scalar_lea.sflag [#allocation3], 1
    %9 = vsyncpa %s8, 0
    loop: start=0, step=1, limit=6
    $region2: #{inner_product_decode_dense.1} parent=1 // loop_pre_header
      _
    $region3: #{inner_product_decode_dense.1} parent=1 // loop_header
      %s11 = sphi 0, %s15
      %p12 = scmp.ge.s32.totalorder %s11, 6
      %s18 = sphi 0, %s30
      %s19 = sphi 0, %s26
      %s20 = sphi 0, %s18
      %s21 = sphi 0, %s19
      %s22 = sphi 0, %s20
      %s23 = sphi 0, %s21
      %s33 = sphi 0, %s35
      %s36 = sphi 0, %s33
      %s37 = sphi 0, %s36
      %s53 = sphi 0, %s37
      %s59 = sphi 0, %s61
      %s62 = sphi 0, %s59
      %s63 = sphi 0, %s62
      %s79 = sphi 0, %s63
      %s87 = sphi 0, %s89
      %s90 = sphi 0, %s87
      %s91 = sphi 0, %s90
      %s107 = sphi 0, %s91
    $region4: #{inner_product_decode_dense.1} parent=1 // loop_header_branch
      %14 = sbr.rel (%p12) target = $region8
    $region5: #{inner_product_decode_dense.1} parent=1 // loop_body
      %s16 = ssub.s32 %s11, 1
      %s17 = ssub.s32 %s11, 2
      %s24 = sadd.s32 1, %s19
      %p25 = scmp.ge.s32.totalorder %s24, 2
      %s26 = scalar_select %p25, 0, %s24
      %s27 = sadd.s32 1, %s18
      %s28 = scalar_select %p25, %s27, %s18
      %p29 = scmp.ge.s32.totalorder %s28, 2
      %s30 = scalar_select %p29, 0, %s28
      %s31 = ssub.s32 %s18, %s30
      %p32 = scmp.eq.s32.totalorder %s31, 0
      %s34 = sadd.s32 %s33, 1
      %s35 = scalar_select %p32, %s33, %s34
      %p38 = pneg %p32
      %p39 = scmp.eq.s32.totalorder %s11, 3
      %p40 = por %p38, %p39
      %p41 = scmp.ne.s32.totalorder %s33, %s36
      %p42 = scmp.eq.s32.totalorder %s11, 0
      %p43 = por %p41, %p42
      %p44 = scmp.ne.s32.totalorder %s33, %s36
      %p45 = scmp.eq.s32.totalorder %s16, 3
      %p46 = por %p44, %p45
      %p47 = scmp.ne.s32.totalorder %s36, %s37
      %p48 = scmp.eq.s32.totalorder %s16, 0
      %p49 = por %p47, %p48
      %p50 = scmp.ne.s32.totalorder %s36, %s37
      %p51 = scmp.eq.s32.totalorder %s17, 3
      %p52 = por %p50, %p51
      %p54 = scmp.ne.s32.totalorder %s37, %s53
      %p55 = scmp.eq.s32.totalorder %s17, 0
      %p56 = por %p54, %p55
      %s57 = ssub.s32 %s19, %s26
      %p58 = scmp.eq.s32.totalorder %s57, 0
      %s60 = sadd.s32 %s59, 1
      %s61 = scalar_select %p58, %s59, %s60
      %p64 = pneg %p58
      %p65 = scmp.eq.s32.totalorder %s11, 3
      %p66 = por %p64, %p65
      %p67 = scmp.ne.s32.totalorder %s59, %s62
      %p68 = scmp.eq.s32.totalorder %s11, 0
      %p69 = por %p67, %p68
      %p70 = scmp.ne.s32.totalorder %s59, %s62
      %p71 = scmp.eq.s32.totalorder %s16, 3
      %p72 = por %p70, %p71
      %p73 = scmp.ne.s32.totalorder %s62, %s63
      %p74 = scmp.eq.s32.totalorder %s16, 0
      %p75 = por %p73, %p74
      %p76 = scmp.ne.s32.totalorder %s62, %s63
      %p77 = scmp.eq.s32.totalorder %s17, 3
      %p78 = por %p76, %p77
      %p80 = scmp.ne.s32.totalorder %s63, %s79
      %p81 = scmp.eq.s32.totalorder %s17, 0
      %p82 = por %p80, %p81
      %s83 = ssub.s32 %s18, %s30
      %s84 = ssub.s32 %s19, %s26
      %s85 = sor.u32 %s83, %s84
      %p86 = scmp.eq.s32.totalorder %s85, 0
      %s88 = sadd.s32 %s87, 1
      %s89 = scalar_select %p86, %s87, %s88
      %p92 = pneg %p86
      %p93 = scmp.eq.s32.totalorder %s11, 3
      %p94 = por %p92, %p93
      %p95 = scmp.ne.s32.totalorder %s87, %s90
      %p96 = scmp.eq.s32.totalorder %s11, 0
      %p97 = por %p95, %p96
      %p98 = scmp.ne.s32.totalorder %s87, %s90
      %p99 = scmp.eq.s32.totalorder %s16, 3
      %p100 = por %p98, %p99
      %p101 = scmp.ne.s32.totalorder %s90, %s91
      %p102 = scmp.eq.s32.totalorder %s16, 0
      %p103 = por %p101, %p102
      %p104 = scmp.ne.s32.totalorder %s90, %s91
      %p105 = scmp.eq.s32.totalorder %s17, 3
      %p106 = por %p104, %p105
      %p108 = scmp.ne.s32.totalorder %s91, %s107
      %p109 = scmp.eq.s32.totalorder %s17, 0
      %p110 = por %p108, %p109
      %p111 = scmp.le.s32.totalorder 1, %s11
      %p112 = scmp.lt.s32.totalorder %s11, 5
      %p113 = pnand %p111, %p112
      %p114 = pneg %p113
      // Predicated region
      $region9: #{inner_product_decode_dense.1} parent=5 // pred_check
        _
      $region10: #{inner_product_decode_dense.1} parent=5 // pred_check_branch
        %116 = sbr.rel (%p113) target = $region12
      $region11: #{inner_product_decode_dense.1} parent=5 // pred_region
        %s117 = ssub.s32 %s11, 1
      $region12: #{inner_product_decode_dense.1} parent=5 // pred_fallthru
        _
      %p118 = scmp.lt.s32.totalorder %s11, 4
      // Predicated region
      $region13: #{inner_product_decode_dense.1} parent=5 // pred_check
        %p119 = pneg %p118
      $region14: #{inner_product_decode_dense.1} parent=5 // pred_check_branch
        %121 = sbr.rel (%p119) target = $region16
      $region15: #{inner_product_decode_dense.1} parent=5 // pred_region
        // Predicated region
        $region17: #{inner_product_decode_dense.1} parent=15 // pred_check
          %p122 = pneg %p43
        $region18: #{inner_product_decode_dense.1} parent=15 // pred_check_branch
          %124 = sbr.rel (%p122) target = $region20
        $region19: #{inner_product_decode_dense.1} parent=15 // pred_region
          %s125 = smul.u32 16, %s18
          %p126 = scmp.lt.s32.totalorder %s125, 31
          %s127 = scalar_select %p126, %s125, 31
          %s128 = smul.addr %s127, 8
          %s129 = scalar_lea.vmem %s0, %s128
          %s130 = smul.u32 16, %s18
        $region20: #{inner_product_decode_dense.1} parent=15 // pred_fallthru
          _
        // Predicated region
        $region21: #{inner_product_decode_dense.1} parent=15 // pred_check
          %p131 = pneg %p69
        $region22: #{inner_product_decode_dense.1} parent=15 // pred_check_branch
          %133 = sbr.rel (%p131) target = $region24
        $region23: #{inner_product_decode_dense.1} parent=15 // pred_region
          %s134 = smul.u32 16, %s19
          %p135 = scmp.lt.s32.totalorder %s134, 31
          %s136 = scalar_select %p135, %s134, 31
          %s137 = smul.addr %s136, 8
          %s138 = scalar_lea.vmem %s1, %s137
          %s139 = smul.u32 16, %s19
        $region24: #{inner_product_decode_dense.1} parent=15 // pred_fallthru
          _
      $region16: #{inner_product_decode_dense.1} parent=5 // pred_fallthru
        _
      %p140 = scmp.le.s32.totalorder 1, %s11
      %p141 = scmp.lt.s32.totalorder %s11, 5
      %p142 = pnand %p140, %p141
      %p143 = pneg %p142
      // Predicated region
      $region25: #{inner_product_decode_dense.1} parent=5 // pred_check
        _
      $region26: #{inner_product_decode_dense.1} parent=5 // pred_check_branch
        %145 = sbr.rel (%p142) target = $region28
      $region27: #{inner_product_decode_dense.1} parent=5 // pred_region
        %s146 = ssub.s32 %s11, 1
        %s147 = smul.u32 16, %s20
        %p148 = scmp.lt.s32.totalorder %s147, 31
        %s149 = scalar_select %p148, %s147, 31
        %s150 = smul.addr %s149, 8
        %s151 = scalar_lea.vmem %s0, %s150
        %p152 = pneg %p49
        %p153 = pneg %p46
        %s154 = smul.u32 16, %s21
        %p155 = scmp.lt.s32.totalorder %s154, 31
        %s156 = scalar_select %p155, %s154, 31
        %s157 = smul.addr %s156, 8
        %s158 = scalar_lea.vmem %s1, %s157
        %p159 = pneg %p75
        %p160 = pneg %p72
        %p161 = pneg %p103
        %p162 = pneg %p100
        %s163 = sand.u32 %s90, 1
        %s164 = scalar_lea.sflag [#allocation3], %s163
        %s165 = sand.u32 %s90, 1
        %s166 = smul.addr %s165, 128
        %s167 = scalar_lea.vmem [#allocation2], %s166
        %s168 = smul.u32 16, %s20
        %p169 = scmp.lt.s32.totalorder %s168, 31
        %s170 = scalar_select %p169, %s168, 31
        %s171 = smul.addr %s170, 8
        %s172 = scalar_lea.vmem %s0, %s171
        %s173 = smul.u32 16, %s20
        %s174 = smul.u32 16, %s21
        %p175 = scmp.lt.s32.totalorder %s174, 31
        %s176 = scalar_select %p175, %s174, 31
        %s177 = smul.addr %s176, 8
        %s178 = scalar_lea.vmem %s1, %s177
        %s179 = smul.u32 16, %s21
        %s180 = smul.u32 16, %s20
        %v181 = vld [vmem:[%s172] sm:$0xff]
        %v182 = vld [vmem:[%s172 + $0x8] sm:$0xff]
        %v183 = vld [vmem:[%s172 + $0x10] sm:$0xff]
        %v184 = vld [vmem:[%s172 + $0x18] sm:$0xff]
        %v185 = vld [vmem:[%s172 + $0x20] sm:$0xff]
        %v186 = vld [vmem:[%s172 + $0x28] sm:$0xff]
        %v187 = vld [vmem:[%s172 + $0x30] sm:$0xff]
        %v188 = vld [vmem:[%s172 + $0x38] sm:$0xff]
        %v189 = vld [vmem:[%s172 + $0x40] sm:$0xff]
        %v190 = vld [vmem:[%s172 + $0x48] sm:$0xff]
        %v191 = vld [vmem:[%s172 + $0x50] sm:$0xff]
        %v192 = vld [vmem:[%s172 + $0x58] sm:$0xff]
        %v193 = vld [vmem:[%s172 + $0x60] sm:$0xff]
        %v194 = vld [vmem:[%s172 + $0x68] sm:$0xff]
        %v195 = vld [vmem:[%s172 + $0x70] sm:$0xff]
        %v196 = vld [vmem:[%s172 + $0x78] sm:$0xff]
        %v197 = vld [vmem:[%s178] sm:$0xff]
        %v198 = vld [vmem:[%s178 + $0x8] sm:$0xff]
        %v199 = vld [vmem:[%s178 + $0x10] sm:$0xff]
        %v200 = vld [vmem:[%s178 + $0x18] sm:$0xff]
        %v201 = vld [vmem:[%s178 + $0x20] sm:$0xff]
        %v202 = vld [vmem:[%s178 + $0x28] sm:$0xff]
        %v203 = vld [vmem:[%s178 + $0x30] sm:$0xff]
        %v204 = vld [vmem:[%s178 + $0x38] sm:$0xff]
        %v205 = vld [vmem:[%s178 + $0x40] sm:$0xff]
        %v206 = vld [vmem:[%s178 + $0x48] sm:$0xff]
        %v207 = vld [vmem:[%s178 + $0x50] sm:$0xff]
        %v208 = vld [vmem:[%s178 + $0x58] sm:$0xff]
        %v209 = vld [vmem:[%s178 + $0x60] sm:$0xff]
        %v210 = vld [vmem:[%s178 + $0x68] sm:$0xff]
        %v211 = vld [vmem:[%s178 + $0x70] sm:$0xff]
        %v212 = vld [vmem:[%s178 + $0x78] sm:$0xff]
        %vm213 = vcmask 261120
        %v215 = vsel %vm213, %v181, 0
        %v218 = vsel %vm213, %v182, 0
        %v221 = vsel %vm213, %v183, 0
        %v224 = vsel %vm213, %v184, 0
        %v227 = vsel %vm213, %v185, 0
        %v230 = vsel %vm213, %v186, 0
        %v233 = vsel %vm213, %v187, 0
        %v236 = vsel %vm213, %v188, 0
        %v239 = vsel %vm213, %v189, 0
        %v242 = vsel %vm213, %v190, 0
        %v245 = vsel %vm213, %v191, 0
        %v248 = vsel %vm213, %v192, 0
        %v251 = vsel %vm213, %v193, 0
        %v254 = vsel %vm213, %v194, 0
        %v257 = vsel %vm213, %v195, 0
        %v260 = vsel %vm213, %v196, 0
        %v263 = vsel %vm213, %v197, 0
        %v266 = vsel %vm213, %v198, 0
        %v269 = vsel %vm213, %v199, 0
        %v272 = vsel %vm213, %v200, 0
        %v275 = vsel %vm213, %v201, 0
        %v278 = vsel %vm213, %v202, 0
        %v281 = vsel %vm213, %v203, 0
        %v284 = vsel %vm213, %v204, 0
        %v287 = vsel %vm213, %v205, 0
        %v290 = vsel %vm213, %v206, 0
        %v293 = vsel %vm213, %v207, 0
        %v296 = vsel %vm213, %v208, 0
        %v299 = vsel %vm213, %v209, 0
        %v302 = vsel %vm213, %v210, 0
        %v305 = vsel %vm213, %v211, 0
        %v308 = vsel %vm213, %v212, 0
        %310 = vmatprep.subr.mxu0 0.0
        %311 = vmatpush1.xpose.msra.mxu0 %v263
        %312 = vmatprep.subr.mxu0 0.0
        %313 = vmatpush1.xpose.msra.mxu0 %v266
        %314 = vmatprep.subr.mxu0 0.0
        %315 = vmatpush1.xpose.msra.mxu0 %v269
        %316 = vmatprep.subr.mxu0 0.0
        %317 = vmatpush1.xpose.msra.mxu0 %v272
        %318 = vmatprep.subr.mxu0 0.0
        %319 = vmatpush1.xpose.msra.mxu0 %v275
        %320 = vmatprep.subr.mxu0 0.0
        %321 = vmatpush1.xpose.msra.mxu0 %v278
        %322 = vmatprep.subr.mxu0 0.0
        %323 = vmatpush1.xpose.msra.mxu0 %v281
        %324 = vmatprep.subr.mxu0 0.0
        %325 = vmatpush1.xpose.msra.mxu0 %v284
        %326 = vmatprep.subr.mxu0 0.0
        %327 = vmatpush1.xpose.msra.mxu0 %v287
        %328 = vmatprep.subr.mxu0 0.0
        %329 = vmatpush1.xpose.msra.mxu0 %v290
        %330 = vmatprep.subr.mxu0 0.0
        %331 = vmatpush1.xpose.msra.mxu0 %v293
        %332 = vmatprep.subr.mxu0 0.0
        %333 = vmatpush1.xpose.msra.mxu0 %v296
        %334 = vmatprep.subr.mxu0 0.0
        %335 = vmatpush1.xpose.msra.mxu0 %v299
        %336 = vmatprep.subr.mxu0 0.0
        %337 = vmatpush1.xpose.msra.mxu0 %v302
        %338 = vmatprep.subr.mxu0 0.0
        %339 = vmatpush1.xpose.msra.mxu0 %v305
        %340 = vmatprep.subr.mxu0 0.0
        %341 = vmatpush1.xpose.msra.mxu0 %v308
        %342 = vmatprep.subr.mxu0 0.0
        %343 = vmatpush1.xpose.msra.mxu0 0.0
        %344 = vmatprep.subr.mxu0 0.0
        %345 = vmatpush1.xpose.msra.mxu0 0.0
        %346 = vmatprep.subr.mxu0 0.0
        %347 = vmatpush1.xpose.msra.mxu0 0.0
        %348 = vmatprep.subr.mxu0 0.0
        %349 = vmatpush1.xpose.msra.mxu0 0.0
        %350 = vmatprep.subr.mxu0 0.0
        %351 = vmatpush1.xpose.msra.mxu0 0.0
        %352 = vmatprep.subr.mxu0 0.0
        %353 = vmatpush1.xpose.msra.mxu0 0.0
        %354 = vmatprep.subr.mxu0 0.0
        %355 = vmatpush1.xpose.msra.mxu0 0.0
        %356 = vmatprep.subr.mxu0 0.0
        %357 = vmatpush1.xpose.msra.mxu0 0.0
        %358 = vmatprep.subr.mxu0 0.0
        %359 = vmatpush1.xpose.msra.mxu0 0.0
        %360 = vmatprep.subr.mxu0 0.0
        %361 = vmatpush1.xpose.msra.mxu0 0.0
        %362 = vmatprep.subr.mxu0 0.0
        %363 = vmatpush1.xpose.msra.mxu0 0.0
        %364 = vmatprep.subr.mxu0 0.0
        %365 = vmatpush1.xpose.msra.mxu0 0.0
        %366 = vmatprep.subr.mxu0 0.0
        %367 = vmatpush1.xpose.msra.mxu0 0.0
        %368 = vmatprep.subr.mxu0 0.0
        %369 = vmatpush1.xpose.msra.mxu0 0.0
        %370 = vmatprep.subr.mxu0 0.0
        %371 = vmatpush1.xpose.msra.mxu0 0.0
        %372 = vmatprep.subr.mxu0 0.0
        %373 = vmatpush1.xpose.msra.mxu0 0.0
        %374 = vmatprep.mubr.f32.mxu0 0.0
        %375 = vmatmul.mubr.f32.gmra.mrb[0].mxu0 %v215
        %v376 = vpop.f32.mrb[0].mxu0
        %v377 = vadd.f32 0.0, %v376
        %v378 = vpop.f32.mrb[0].mxu0
        %379 = vmatprep.mubr.f32.mxu0 0.0
        %380 = vmatmul.mubr.f32.gmra.mrb[0].mxu0 %v218
        %v381 = vpop.f32.mrb[0].mxu0
        %v382 = vadd.f32 0.0, %v381
        %v383 = vpop.f32.mrb[0].mxu0
        %384 = vmatprep.mubr.f32.mxu0 0.0
        %385 = vmatmul.mubr.f32.gmra.mrb[0].mxu0 %v221
        %v386 = vpop.f32.mrb[0].mxu0
        %v387 = vadd.f32 0.0, %v386
        %v388 = vpop.f32.mrb[0].mxu0
        %389 = vmatprep.mubr.f32.mxu0 0.0
        %390 = vmatmul.mubr.f32.gmra.mrb[0].mxu0 %v224
        %v391 = vpop.f32.mrb[0].mxu0
        %v392 = vadd.f32 0.0, %v391
        %v393 = vpop.f32.mrb[0].mxu0
        %394 = vmatprep.mubr.f32.mxu0 0.0
        %395 = vmatmul.mubr.f32.gmra.mrb[0].mxu0 %v227
        %v396 = vpop.f32.mrb[0].mxu0
        %v397 = vadd.f32 0.0, %v396
        %v398 = vpop.f32.mrb[0].mxu0
        %399 = vmatprep.mubr.f32.mxu0 0.0
        %400 = vmatmul.mubr.f32.gmra.mrb[0].mxu0 %v230
        %v401 = vpop.f32.mrb[0].mxu0
        %v402 = vadd.f32 0.0, %v401
        %v403 = vpop.f32.mrb[0].mxu0
        %404 = vmatprep.mubr.f32.mxu0 0.0
        %405 = vmatmul.mubr.f32.gmra.mrb[0].mxu0 %v233
        %v406 = vpop.f32.mrb[0].mxu0
        %v407 = vadd.f32 0.0, %v406
        %v408 = vpop.f32.mrb[0].mxu0
        %409 = vmatprep.mubr.f32.mxu0 0.0
        %410 = vmatmul.mubr.f32.gmra.mrb[0].mxu0 %v236
        %v411 = vpop.f32.mrb[0].mxu0
        %v412 = vadd.f32 0.0, %v411
        %v413 = vpop.f32.mrb[0].mxu0
        %414 = vmatprep.mubr.f32.mxu0 0.0
        %415 = vmatmul.mubr.f32.gmra.mrb[0].mxu0 %v239
        %v416 = vpop.f32.mrb[0].mxu0
        %v417 = vadd.f32 0.0, %v416
        %v418 = vpop.f32.mrb[0].mxu0
        %419 = vmatprep.mubr.f32.mxu0 0.0
        %420 = vmatmul.mubr.f32.gmra.mrb[0].mxu0 %v242
        %v421 = vpop.f32.mrb[0].mxu0
        %v422 = vadd.f32 0.0, %v421
        %v423 = vpop.f32.mrb[0].mxu0
        %424 = vmatprep.mubr.f32.mxu0 0.0
        %425 = vmatmul.mubr.f32.gmra.mrb[0].mxu0 %v245
        %v426 = vpop.f32.mrb[0].mxu0
        %v427 = vadd.f32 0.0, %v426
        %v428 = vpop.f32.mrb[0].mxu0
        %429 = vmatprep.mubr.f32.mxu0 0.0
        %430 = vmatmul.mubr.f32.gmra.mrb[0].mxu0 %v248
        %v431 = vpop.f32.mrb[0].mxu0
        %v432 = vadd.f32 0.0, %v431
        %v433 = vpop.f32.mrb[0].mxu0
        %434 = vmatprep.mubr.f32.mxu0 0.0
        %435 = vmatmul.mubr.f32.gmra.mrb[0].mxu0 %v251
        %v436 = vpop.f32.mrb[0].mxu0
        %v437 = vadd.f32 0.0, %v436
        %v438 = vpop.f32.mrb[0].mxu0
        %439 = vmatprep.mubr.f32.mxu0 0.0
        %440 = vmatmul.mubr.f32.gmra.mrb[0].mxu0 %v254
        %v441 = vpop.f32.mrb[0].mxu0
        %v442 = vadd.f32 0.0, %v441
        %v443 = vpop.f32.mrb[0].mxu0
        %444 = vmatprep.mubr.f32.mxu0 0.0
        %445 = vmatmul.mubr.f32.gmra.mrb[0].mxu0 %v257
        %v446 = vpop.f32.mrb[0].mxu0
        %v447 = vadd.f32 0.0, %v446
        %v448 = vpop.f32.mrb[0].mxu0
        %449 = vmatprep.mubr.f32.mxu0 0.0
        %450 = vmatmul.mubr.f32.gmra.mrb[0].mxu0 %v260
        %v451 = vpop.f32.mrb[0].mxu0
        %v452 = vadd.f32 0.0, %v451
        %v453 = vpop.f32.mrb[0].mxu0
        %454 = vdwg.mxu0
        %v455 = vmul.f32 %v377, 0.5
        %v456 = vmul.f32 %v382, 0.5
        %v457 = vmul.f32 %v387, 0.5
        %v458 = vmul.f32 %v392, 0.5
        %v459 = vmul.f32 %v397, 0.5
        %v460 = vmul.f32 %v402, 0.5
        %v461 = vmul.f32 %v407, 0.5
        %v462 = vmul.f32 %v412, 0.5
        %v463 = vmul.f32 %v417, 0.5
        %v464 = vmul.f32 %v422, 0.5
        %v465 = vmul.f32 %v427, 0.5
        %v466 = vmul.f32 %v432, 0.5
        %v467 = vmul.f32 %v437, 0.5
        %v468 = vmul.f32 %v442, 0.5
        %v469 = vmul.f32 %v447, 0.5
        %v470 = vmul.f32 %v452, 0.5
        %v471 = vtanh.pop %v455
        %v472 = vtanh.pop %v456
        %v473 = vtanh.pop %v457
        %v474 = vtanh.pop %v458
        %v475 = vtanh.pop %v459
        %v476 = vtanh.pop %v460
        %v477 = vtanh.pop %v461
        %v478 = vtanh.pop %v462
        %v479 = vtanh.pop %v463
        %v480 = vtanh.pop %v464
        %v481 = vtanh.pop %v465
        %v482 = vtanh.pop %v466
        %v483 = vtanh.pop %v467
        %v484 = vtanh.pop %v468
        %v485 = vtanh.pop %v469
        %v486 = vtanh.pop %v470
        %v487 = vmul.f32 %v471, 0.5
        %v488 = vmul.f32 %v472, 0.5
        %v489 = vmul.f32 %v473, 0.5
        %v490 = vmul.f32 %v474, 0.5
        %v491 = vmul.f32 %v475, 0.5
        %v492 = vmul.f32 %v476, 0.5
        %v493 = vmul.f32 %v477, 0.5
        %v494 = vmul.f32 %v478, 0.5
        %v495 = vmul.f32 %v479, 0.5
        %v496 = vmul.f32 %v480, 0.5
        %v497 = vmul.f32 %v481, 0.5
        %v498 = vmul.f32 %v482, 0.5
        %v499 = vmul.f32 %v483, 0.5
        %v500 = vmul.f32 %v484, 0.5
        %v501 = vmul.f32 %v485, 0.5
        %v502 = vmul.f32 %v486, 0.5
        %v503 = vadd.f32 %v487, 0.5
        %v504 = vadd.f32 %v488, 0.5
        %v505 = vadd.f32 %v489, 0.5
        %v506 = vadd.f32 %v490, 0.5
        %v507 = vadd.f32 %v491, 0.5
        %v508 = vadd.f32 %v492, 0.5
        %v509 = vadd.f32 %v493, 0.5
        %v510 = vadd.f32 %v494, 0.5
        %v511 = vadd.f32 %v495, 0.5
        %v512 = vadd.f32 %v496, 0.5
        %v513 = vadd.f32 %v497, 0.5
        %v514 = vadd.f32 %v498, 0.5
        %v515 = vadd.f32 %v499, 0.5
        %v516 = vadd.f32 %v500, 0.5
        %v517 = vadd.f32 %v501, 0.5
        %v518 = vadd.f32 %v502, 0.5
        %519 = vst [vmem:[%s167] sm:$0xff] %v503
        %520 = vst [vmem:[%s167 + $0x8] sm:$0xff] %v504
        %521 = vst [vmem:[%s167 + $0x10] sm:$0xff] %v505
        %522 = vst [vmem:[%s167 + $0x18] sm:$0xff] %v506
        %523 = vst [vmem:[%s167 + $0x20] sm:$0xff] %v507
        %524 = vst [vmem:[%s167 + $0x28] sm:$0xff] %v508
        %525 = vst [vmem:[%s167 + $0x30] sm:$0xff] %v509
        %526 = vst [vmem:[%s167 + $0x38] sm:$0xff] %v510
        %527 = vst [vmem:[%s167 + $0x40] sm:$0xff] %v511
        %528 = vst [vmem:[%s167 + $0x48] sm:$0xff] %v512
        %529 = vst [vmem:[%s167 + $0x50] sm:$0xff] %v513
        %530 = vst [vmem:[%s167 + $0x58] sm:$0xff] %v514
        %531 = vst [vmem:[%s167 + $0x60] sm:$0xff] %v515
        %532 = vst [vmem:[%s167 + $0x68] sm:$0xff] %v516
        %533 = vst [vmem:[%s167 + $0x70] sm:$0xff] %v517
        %534 = vst [vmem:[%s167 + $0x78] sm:$0xff] %v518
        %s535 = sand.u32 %s90, 1
        %s536 = scalar_lea.sflag [#allocation3], %s535
        %s537 = sand.u32 %s90, 1
        %s538 = smul.addr %s537, 128
        %s539 = scalar_lea.vmem [#allocation2], %s538
        // Predicated region
        $region29: #{inner_product_decode_dense.1} parent=27 // pred_check
          %p540 = pneg %p100
        $region30: #{inner_product_decode_dense.1} parent=27 // pred_check_branch
          %542 = sbr.rel (%p540) target = $region32
        $region31: #{inner_product_decode_dense.1} parent=27 // pred_region
          %s543 = smul.u32 16, %s20
          %s545 = ssub.s32 2048, 2048
          %546 = vsyncadd %s536, %s545
          %s547 = smul.addr %s543, 2
          %s548 = sadd.s32 %s21, %s547
          %s549 = smul.addr %s548, 128
          %s550 = scalar_lea.hbm %s2, %s549
          %s551 = sshll.u32 %s539, 4
          %s552 = int_to_ptr.vmem [resolvable:$true] %s551
          %557 = dma.vmem_to_hbm [thread:$0]  %s552, 2048, %s550, %s536, 128, 256, 8
        $region32: #{inner_product_decode_dense.1} parent=27 // pred_fallthru
          _
      $region28: #{inner_product_decode_dense.1} parent=5 // pred_fallthru
        _
      %p558 = scmp.le.s32.totalorder 2, %s11
      // Predicated region
      $region33: #{inner_product_decode_dense.1} parent=5 // pred_check
        %p559 = pneg %p558
      $region34: #{inner_product_decode_dense.1} parent=5 // pred_check_branch
        %561 = sbr.rel (%p559) target = $region36
      $region35: #{inner_product_decode_dense.1} parent=5 // pred_region
        %s562 = ssub.s32 %s11, 2
        // Predicated region
        $region37: #{inner_product_decode_dense.1} parent=35 // pred_check
          %p563 = pneg %p106
        $region38: #{inner_product_decode_dense.1} parent=35 // pred_check_branch
          %565 = sbr.rel (%p563) target = $region40
        $region39: #{inner_product_decode_dense.1} parent=35 // pred_region
          %s566 = sand.u32 %s91, 1
          %s567 = scalar_lea.sflag [#allocation3], %s566
          %s568 = sand.u32 %s91, 1
          %s569 = smul.addr %s568, 128
          %s570 = scalar_lea.vmem [#allocation2], %s569
          %571 = dma.done %s567, 2048
        $region40: #{inner_product_decode_dense.1} parent=35 // pred_fallthru
          _
      $region36: #{inner_product_decode_dense.1} parent=5 // pred_fallthru
        _
    $region6: #{inner_product_decode_dense.1} parent=1 // loop_footer
      %s15 = sadd.s32 1, %s11
    $region7: #{inner_product_decode_dense.1} parent=1 // loop_footer_branch
      %10 = sbr.rel target = $region3
    $region8: #{inner_product_decode_dense.1} parent=1 // loop_exit
      _
    %572 = vsyncpa [#allocation3], 1
    %s573 = scalar_lea.sflag [#allocation3], 1
    %574 = vsyncpa %s573, 1

</llo_original>
